<compile_context>
chip_gen: v7x
topology: tpu7x:2x2x1
jax: 0.10.0
libtpu: 0.0.40
codegen_flags: <defaults>
</compile_context>

<pallas_src>
import functools

import jax
import jax.numpy as jnp
from jax.experimental import pallas as pl
from jax.experimental.pallas import tpu as pltpu


def _round_up(x, m):
    return (x + m - 1) // m * m


def _sje_loss1_kernel(x_ref, o_ref, acc_ref, *, total_b, tile_b, tiles_per_core):
    """Processes one (tile_b, M) block of the natural (B, M) layout.

    x_ref:   (tile_b, M) input block (kept in the input dtype).
    o_ref:   (1, 128) per-core output block; the core's partial sum is written to
             lane 0 on the last step of its inner loop (other lanes are zero).
    acc_ref: (tile_b, 1) f32 per-core scratch accumulating per-sample hinges.
    """
    c = pl.program_id(0)          # core / "parallel" axis
    i = pl.program_id(1)          # sequential tile axis for this core

    @pl.when(i == 0)
    def _init():
        acc_ref[...] = jnp.zeros_like(acc_ref)

    x = x_ref[...]                                                # (tile_b, M)

    # max_{i>=1} f[i]: mask lane 0 to -inf (VPU select) instead of slicing [:, 1:].
    lane = jax.lax.broadcasted_iota(jnp.int32, (1, x.shape[1]), 1)
    neg = jnp.asarray(-jnp.inf, x.dtype)
    rest_max = jnp.max(jnp.where(lane >= 1, x, neg),
                       axis=1, keepdims=True)                     # (tile_b, 1)
    f0 = x[:, 0:1]                                                # (tile_b, 1)

    hinge = jnp.maximum(
        1.0 + rest_max.astype(jnp.float32) - f0.astype(jnp.float32), 0.0)

    # Mask rows past the end of the batch: the last (partial) tile and the fully
    # out-of-range tile a core sees when the tile count is odd.  Garbage / NaN in
    # the padded rows is discarded by the select (mask applied after the hinge).
    tile_idx = c * tiles_per_core + i
    valid = total_b - tile_idx * tile_b                           # scalar, may be <= 0
    rows = jax.lax.broadcasted_iota(jnp.int32, (tile_b, 1), 0)
    acc_ref[...] += jnp.where(rows < valid, hinge, 0.0)

    @pl.when(i == pl.num_programs(1) - 1)
    def _finalize():
        partial = jnp.sum(acc_ref[...], axis=0, keepdims=True)    # (1, 1)
        out_lane = jax.lax.broadcasted_iota(jnp.int32, (1, 128), 1)
        o_ref[...] = jnp.where(out_lane == 0, partial, 0.0)       # lane-dense block


def sje_loss1(batch, *, vmem_budget_bytes=12 * 1024 * 1024, max_rows_per_tile=None):
    """batch: (B, M, 1) float array -> scalar float32 loss (sum over batch)."""
    x = jnp.asarray(batch)
    assert x.ndim == 3 and x.shape[-1] == 1, "expected (B, M, 1)"
    B, M, _ = x.shape
    # PyTorch would also fail for M == 1 (max over empty f[1:]).
    assert M >= 2, "SJELoss1 requires M >= 2"

    x2 = x.reshape(B, M)          # contiguous squeeze: metadata only, no HBM pass

    # --- tile sizing by VMEM byte budget -------------------------------------
    # Resident bytes per batch row (everything lane-padded to 128 in VMEM):
    #   2 double-buffered input rows + 1 f32 accumulator row.
    itemsize = x2.dtype.itemsize
    lanes_in = _round_up(M, 128)
    bytes_per_row = 2 * lanes_in * itemsize + 128 * 4

    if B < 128:
        tile_b = B                                  # single full-extent tile
    else:
        tile_b = max((vmem_budget_bytes // bytes_per_row) // 128 * 128, 128)
        tile_b = min(tile_b, (B // 128) * 128)      # never exceed the array extent
        if max_rows_per_tile is not None:
            tile_b = min(tile_b, max(_round_up(max_rows_per_tile, 128), 128))

    tiles_total = pl.cdiv(B, tile_b)
    # v7x has 2 TensorCores; the leading "parallel" axis splits the batch tiles
    # across them (on single-core v5e/v6e it is just a sequential length-2 loop).
    num_cores = 2 if tiles_total >= 2 else 1
    tiles_per_core = pl.cdiv(tiles_total, num_cores)

    kernel = functools.partial(
        _sje_loss1_kernel, total_b=B, tile_b=tile_b, tiles_per_core=tiles_per_core)

    def x_index(c, i):
        # Clamp the (possibly out-of-range) final tile of a core; its rows are
        # fully masked inside the kernel regardless of what data is loaded.
        t = jnp.minimum(c * tiles_per_core + i, tiles_total - 1)
        return (t, 0)

    out = pl.pallas_call(
        kernel,
        out_shape=jax.ShapeDtypeStruct((1, num_cores * 128), jnp.float32),
        grid=(num_cores, tiles_per_core),
        in_specs=[pl.BlockSpec((tile_b, M), x_index)],
        out_specs=pl.BlockSpec((1, 128), lambda c, i: (0, c)),
        scratch_shapes=[pltpu.VMEM((tile_b, 1), jnp.float32)],
        compiler_params=pltpu.CompilerParams(
            dimension_semantics=("parallel", "arbitrary"),
            vmem_limit_bytes=32 * 1024 * 1024),
    )(x2)
    # Each core's partial sits in lane 0 of its (1, 128) block; other lanes are 0.
    return jnp.sum(out)


def _reference(batch):
    """Pure-JAX reference mirroring the PyTorch module."""
    x = jnp.asarray(batch, jnp.float32)[..., 0]                   # (B, M)
    hinge = jnp.maximum(1.0 + x[:, 1:] - x[:, 0:1], 0.0)          # clamp(1+f[1:]-f[0], 0)
    return jnp.sum(jnp.max(hinge, axis=1))


if __name__ == "__main__":
    key = jax.random.PRNGKey(0)
    k1, k2 = jax.random.split(key)

    # Test 1: tiny shape -> single full-extent tile, single core.
    B1, M1 = 4, 16
    batch1 = jax.random.normal(k1, (B1, M1, 1), dtype=jnp.float32)
    loss1 = sje_loss1(batch1)
    jax.block_until_ready(loss1)
    ref1 = _reference(batch1)
    assert jnp.allclose(loss1, ref1, rtol=1e-6, atol=1e-6), (loss1, ref1)

    # Test 2: multi-tile grid (2, 2): two-way core split, one partial remainder
    # tile (44 valid rows) and one fully-masked out-of-range tile.
    B2, M2 = 300, 8
    batch2 = jax.random.normal(k2, (B2, M2, 1), dtype=jnp.float32)
    loss2 = sje_loss1(batch2, max_rows_per_tile=128)
    jax.block_until_ready(loss2)
    ref2 = _reference(batch2)
    assert jnp.allclose(loss2, ref2, rtol=1e-5, atol=1e-4), (loss2, ref2)

    print("KERNEL_OK")
</pallas_src>

<mosaic_0001>
module attributes {stable_mosaic.version = 11 : i64} {
  func.func @_sje_loss1_kernel(%arg0: i32, %arg1: i32, %arg2: memref<4x16xf32, #tpu.memory_space<vmem>>, %arg3: memref<1x128xf32, #tpu.memory_space<vmem>>, %arg4: memref<4x1xf32, #tpu.memory_space<vmem>>) attributes {dimension_semantics = [#tpu.dimension_semantics<parallel>, #tpu.dimension_semantics<arbitrary>], iteration_bounds = array<i64: 1, 1>, scalar_prefetch = 0 : i64, scratch_operands = 1 : i64, tpu.core_type = #tpu.core_type<tc>, window_params = [{transform_indices = @transform_0, window_bounds = array<i64: 4, 16>}, {transform_indices = @transform_1, window_bounds = array<i64: 1, 128>}]} {
    %c0_i32 = arith.constant 0 : i32
    %0 = arith.cmpi eq, %arg1, %c0_i32 : i32
    %1 = arith.extui %0 : i1 to i32
    %c0_i32_0 = arith.constant 0 : i32
    %2 = arith.cmpi ne, %1, %c0_i32_0 : i32
    scf.if %2 {
      %cst_14 = arith.constant 0.000000e+00 : f32
      %34 = vector.broadcast %cst_14 : f32 to vector<4x1xf32>
      %c0_15 = arith.constant 0 : index
      %c0_16 = arith.constant 0 : index
      %35 = vector.load %arg4[%c0_15, %c0_16] : memref<4x1xf32, #tpu.memory_space<vmem>>, vector<4x1xf32>
      tpu.vector_store %arg4[%c0_15, %c0_16], %34 {strides = array<i32>} : memref<4x1xf32, #tpu.memory_space<vmem>>, vector<4x1xf32>,
    } else {
    }
    %c0 = arith.constant 0 : index
    %c0_1 = arith.constant 0 : index
    %3 = vector.load %arg2[%c0, %c0_1] : memref<4x16xf32, #tpu.memory_space<vmem>>, vector<4x16xf32>
    %4 = tpu.iota {dimensions = array<i32: 1>} : vector<1x16xi32>
    %c1_i32 = arith.constant 1 : i32
    %5 = vector.broadcast %c1_i32 : i32 to vector<1x16xi32>
    %6 = arith.cmpi sge, %4, %5 : vector<1x16xi32>
    %cst = arith.constant 0xFF800000 : f32
    %7 = vector.shape_cast %6 : vector<1x16xi1> to vector<1x16xi1>
    %8 = vector.broadcast %7 : vector<1x16xi1> to vector<4x16xi1>
    %9 = vector.broadcast %cst : f32 to vector<4x16xf32>
    %10 = arith.select %8, %3, %9 : vector<4x16xi1>, vector<4x16xf32>
    %cst_2 = arith.constant dense<0xFF800000> : vector<4xf32>
    %11 = vector.multi_reduction <maximumf>, %10, %cst_2 [1] : vector<4x16xf32> to vector<4xf32>
    %12 = vector.shape_cast %11 : vector<4xf32> to vector<4x1xf32>
    %13 = vector.extract_strided_slice %3 {offsets = [0, 0], sizes = [4, 1], strides = [1, 1]} : vector<4x16xf32> to vector<4x1xf32>
    %cst_3 = arith.constant 1.000000e+00 : f32
    %14 = vector.broadcast %cst_3 : f32 to vector<4x1xf32>
    %15 = arith.addf %14, %12 : vector<4x1xf32>
    %16 = arith.subf %15, %13 : vector<4x1xf32>
    %cst_4 = arith.constant 0.000000e+00 : f32
    %17 = vector.broadcast %cst_4 : f32 to vector<4x1xf32>
    %18 = arith.maximumf %16, %17 : vector<4x1xf32>
    %c1_i32_5 = arith.constant 1 : i32
    %19 = arith.muli %arg0, %c1_i32_5 : i32
    %20 = arith.addi %19, %arg1 : i32
    %c4_i32 = arith.constant 4 : i32
    %21 = arith.muli %20, %c4_i32 : i32
    %c4_i32_6 = arith.constant 4 : i32
    %22 = arith.subi %c4_i32_6, %21 : i32
    %23 = tpu.iota {dimensions = array<i32: 0>} : vector<4x1xi32>
    %c0_7 = arith.constant 0 : index
    %c0_8 = arith.constant 0 : index
    %24 = vector.load %arg4[%c0_7, %c0_8] : memref<4x1xf32, #tpu.memory_space<vmem>>, vector<4x1xf32>
    %25 = vector.broadcast %22 : i32 to vector<4x1xi32>
    %26 = arith.cmpi slt, %23, %25 : vector<4x1xi32>
    %cst_9 = arith.constant 0.000000e+00 : f32
    %27 = vector.broadcast %cst_9 : f32 to vector<4x1xf32>
    %28 = arith.select %26, %18, %27 : vector<4x1xi1>, vector<4x1xf32>
    %29 = arith.addf %24, %28 : vector<4x1xf32>
    %c0_10 = arith.constant 0 : index
    %c0_11 = arith.constant 0 : index
    %30 = vector.load %arg4[%c0_10, %c0_11] : memref<4x1xf32, #tpu.memory_space<vmem>>, vector<4x1xf32>
    tpu.vector_store %arg4[%c0_10, %c0_11], %29 {strides = array<i32>} : memref<4x1xf32, #tpu.memory_space<vmem>>, vector<4x1xf32>,
    %c0_i32_12 = arith.constant 0 : i32
    %31 = arith.cmpi eq, %arg1, %c0_i32_12 : i32
    %32 = arith.extui %31 : i1 to i32
    %c0_i32_13 = arith.constant 0 : i32
    %33 = arith.cmpi ne, %32, %c0_i32_13 : i32
    scf.if %33 {
      %c0_14 = arith.constant 0 : index
      %c0_15 = arith.constant 0 : index
      %34 = vector.load %arg4[%c0_14, %c0_15] : memref<4x1xf32, #tpu.memory_space<vmem>>, vector<4x1xf32>
      %cst_16 = arith.constant dense<0.000000e+00> : vector<1xf32>
      %35 = vector.multi_reduction <add>, %34, %cst_16 [0] : vector<4x1xf32> to vector<1xf32>
      %36 = vector.shape_cast %35 : vector<1xf32> to vector<1x1xf32>
      %37 = tpu.iota {dimensions = array<i32: 1>} : vector<1x128xi32>
      %c0_i32_17 = arith.constant 0 : i32
      %38 = vector.broadcast %c0_i32_17 : i32 to vector<1x128xi32>
      %39 = arith.cmpi eq, %37, %38 : vector<1x128xi32>
      %cst_18 = arith.constant 0.000000e+00 : f32
      %40 = vector.shape_cast %36 : vector<1x1xf32> to vector<1x1xf32>
      %41 = vector.broadcast %40 : vector<1x1xf32> to vector<1x128xf32>
      %42 = vector.broadcast %cst_18 : f32 to vector<1x128xf32>
      %43 = arith.select %39, %41, %42 : vector<1x128xi1>, vector<1x128xf32>
      %c0_19 = arith.constant 0 : index
      %c0_20 = arith.constant 0 : index
      %44 = vector.load %arg3[%c0_19, %c0_20] : memref<1x128xf32, #tpu.memory_space<vmem>>, vector<1x128xf32>
      tpu.vector_store %arg3[%c0_19, %c0_20], %43 {strides = array<i32>} : memref<1x128xf32, #tpu.memory_space<vmem>>, vector<1x128xf32>,
    } else {
    }
    return
  }
  func.func @transform_0(%arg0: i32, %arg1: i32) -> (i32, i32) {
    %c1_i32 = arith.constant 1 : i32
    %0 = arith.muli %arg0, %c1_i32 : i32
    %1 = arith.addi %0, %arg1 : i32
    %c0_i32 = arith.constant 0 : i32
    %2 = arith.minsi %1, %c0_i32 : i32
    %c0_i32_0 = arith.constant 0 : i32
    %c0_i32_1 = arith.constant 0 : i32
    return %2, %c0_i32_0 : i32, i32
  }
  func.func @transform_1(%arg0: i32, %arg1: i32) -> (i32, i32) {
    %c0_i32 = arith.constant 0 : i32
    %c0_i32_0 = arith.constant 0 : i32
    return %c0_i32, %arg0 : i32, i32
  }
}

</mosaic_0001>

<llo_original>
// kernel: tpu_custom_call.1
$region0: #{tpu_custom_call.1}
  #allocation0 [shape = 'u32[]', space=smem, size = 0x4, offset = 0x4, fixed_abs, tag = 'smem constant byte address 0x4 - core index']
  #allocation1 [shape = 'u32[144,128]{1,0:T(1,128)}', space=vmem, size = 0x12000, scoped, tag = 'internal scratch']
  #allocation2 [shape = 'f32[4,1]{1,0:T(4,128)}', space=vmem, size = 0x800, scoped, tag = 'scratch operand']
  %s0 = inlined_call_operand.hbm [shape: f32[4,16], index: 0, kind: input, shape index: {}]
  %s1 = inlined_call_operand.hbm [shape: f32[1,128], index: 1, kind: output, shape index: {}]
  %s2 = sld [smem:[#allocation0]]
  $region26: #{tpu_custom_call.1} parent=0
    _
  %s4 = ssub.s32 1, %s2
  %s5 = scalar_select 0, %s4, %s2
  $region1: #{tpu_custom_call.1} parent=0
    #allocation3 [shape = 'u8[2048]{0}', space=vmem, size = 0x800, scoped, tag = 'input window, operand 0, single buffered']
    #allocation4 [shape = 's32[1]{0}', space=sflag, size = 0x4, scoped, tag = 'scoped memory for tpu_custom_call.1']
    #allocation5 [shape = 's32[1]{0}', space=sflag, size = 0x4, scoped, tag = 'scoped memory for tpu_custom_call.1']
    #allocation6 [shape = 'u8[512]{0}', space=vmem, size = 0x400, scoped, tag = 'output window, operand 0, single buffered']
    %6 = vsyncpa [#allocation4], 0
    %7 = vsyncpa [#allocation5], 0
    // Predicated region
    $region2: #{tpu_custom_call.1} parent=1 // pred_check
      _
    $region3: #{tpu_custom_call.1} parent=1 // pred_check_branch
      %9 = sbr.rel (0) target = $region5
    $region4: #{tpu_custom_call.1} parent=1 // pred_region
      %s10 = sadd.s32 0, 0
      %p11 = scmp.lt.s32.totalorder %s10, 0
      %s12 = scalar_select %p11, %s10, 0
      %s14 = ssub.s32 64, 64
      %15 = vsyncadd [#allocation4], %s14
      %s16 = smul.addr %s12, 64
      %s17 = scalar_lea.hbm %s0, %s16
      %s19 = sshll.u32 [#allocation3], 4
      %s20 = int_to_ptr.vmem [resolvable:$true] %s19
      %22 = dma.hbm_to_vmem [thread:$0]  %s17, 64, %s20, [#allocation4]
    $region5: #{tpu_custom_call.1} parent=1 // pred_fallthru
      _
    // Predicated region
    $region6: #{tpu_custom_call.1} parent=1 // pred_check
      _
    $region7: #{tpu_custom_call.1} parent=1 // pred_check_branch
      %24 = sbr.rel (0) target = $region9
    $region8: #{tpu_custom_call.1} parent=1 // pred_region
      %25 = dma.done [#allocation4], 64
    $region9: #{tpu_custom_call.1} parent=1 // pred_fallthru
      _
    %s26 = sadd.s32 0, 0
    %p27 = scmp.lt.s32.totalorder %s26, 0
    %s28 = scalar_select %p27, %s26, 0
    %p29 = scmp.eq.s32.totalorder 0, 0
    // Predicated region
    $region10: #{tpu_custom_call.1} parent=1 // pred_check
      %p30 = pneg %p29
    $region11: #{tpu_custom_call.1} parent=1 // pred_check_branch
      %32 = sbr.rel (%p30) target = $region13
    $region12: #{tpu_custom_call.1} parent=1 // pred_region
      %vm33 = vcmask 3072
      %34 = vst.msk [vmem:[#allocation2] sm:$0xf] %vm33, 0.0
    $region13: #{tpu_custom_call.1} parent=1 // pred_fallthru
      _
    %v35 = vld [vmem:[#allocation3] sm:$0xf]
    %v36 = vlaneseq
    %v37 = vand.u32 %v36, 127
    %vm38 = vcmp.ge.s32.totalorder %v37, 1
    %v39 = vsel %vm38, 1, 0
    %vm40 = vcmp.eq.s32.totalorder %v39, 1
    %v41 = vsel %vm40, %v35, -inf
    %vm42 = vcmask 125952
    %v43 = vsel %vm42, %v41, -inf
    %44 = vmax.xlane.f32.xlu0 %v43
    %v45 = vpop.xlane.xlu0 %44
    %v46 = vadd.f32 %v45, 1.0
    %v47 = vsub.f32 %v46, %v35
    %v48 = vmax.f32 %v47, 0.0
    %s49 = sadd.s32 0, 0
    %s50 = smul.u32 %s49, 4
    %s51 = ssub.s32 4, %s50
    %v52 = vlaneseq
    %v53 = vshrl.u32 %v52, 7
    %v54 = vld [vmem:[#allocation2] sm:$0xf]
    %v55 = vstv %s51
    %vm56 = vcmp.lt.s32.totalorder %v53, %v55
    %v57 = vsel %vm56, %v48, 0.0
    %v58 = vadd.f32 %v54, %v57
    %vm59 = vcmask 3072
    %60 = vst.msk [vmem:[#allocation2] sm:$0xf] %vm59, %v58
    // Predicated region
    $region14: #{tpu_custom_call.1} parent=1 // pred_check
      %p61 = pneg %p29
    $region15: #{tpu_custom_call.1} parent=1 // pred_check_branch
      %63 = sbr.rel (%p61) target = $region17
    $region16: #{tpu_custom_call.1} parent=1 // pred_region
      %v64 = vld [vmem:[#allocation2] sm:$0xf]
      %v65 = vsel %vm59, %v64, 0.0
      %v66 = vrot.slane %v65, 4
      %v67 = vadd.f32 %v65, %v66
      %v68 = vrot.slane %v67, 2
      %v69 = vadd.f32 %v67, %v68
      %v70 = vrot.slane %v69, 1
      %v71 = vadd.f32 %v69, %v70
      %vm72 = vcmp.eq.s32.totalorder %v37, 0
      %74 = vset.pattern.permute.xlu0 0
      %75 = vperm.xlu0 %74, %v71
      %v76 = vpop.permute.xlu0 %75
      %v78 = vsel %vm72, %v76, 0.0
      %79 = vst [vmem:[#allocation6] sm:$0x1] %v78
    $region17: #{tpu_custom_call.1} parent=1 // pred_fallthru
      _
    // Predicated region
    $region18: #{tpu_custom_call.1} parent=1 // pred_check
      _
    $region19: #{tpu_custom_call.1} parent=1 // pred_check_branch
      %81 = sbr.rel (0) target = $region21
    $region20: #{tpu_custom_call.1} parent=1 // pred_region
      %s83 = ssub.s32 16, 16
      %84 = vsyncadd [#allocation5], %s83
      %s86 = sshll.u32 [#allocation6], 4
      %s87 = int_to_ptr.vmem [resolvable:$true] %s86
      %89 = dma.vmem_to_hbm [thread:$0]  %s87, 16, %s1, [#allocation5]
    $region21: #{tpu_custom_call.1} parent=1 // pred_fallthru
      _
    // Predicated region
    $region22: #{tpu_custom_call.1} parent=1 // pred_check
      _
    $region23: #{tpu_custom_call.1} parent=1 // pred_check_branch
      %91 = sbr.rel (0) target = $region25
    $region24: #{tpu_custom_call.1} parent=1 // pred_region
      %92 = dma.done [#allocation5], 16
    $region25: #{tpu_custom_call.1} parent=1 // pred_fallthru
      _
    %93 = vsyncpa [#allocation4], 1
    %94 = vsyncpa [#allocation5], 1

</llo_original>
